<compile_context>
chip_gen: v6e
topology: v6e:2x2x1
jax: 0.10.0
libtpu: 0.0.40
codegen_flags: <defaults>
</compile_context>

<pallas_src>
import functools
from typing import Optional

import jax
import jax.numpy as jnp
from jax.experimental import pallas as pl
from jax.experimental.pallas import tpu as pltpu


def _shift_up(x, s, axis):
    """out[..., i, ...] = x[..., (i + s) % n, ...]  (== jnp.roll(x, -s, axis)).

    Uses pltpu.roll (XLU rotate slot) when the axis size is aligned to the
    native tiling (128 lanes / 8*packing sublanes); falls back to jnp.roll
    otherwise (correct, just slower -- only hit for exotic shapes).
    """
    n = x.shape[axis]
    s = s % n
    if s == 0:
        return x
    ax = axis % x.ndim
    packing = max(1, 4 // jnp.dtype(x.dtype).itemsize)
    lane_ok = (ax == x.ndim - 1) and (n % 128 == 0)
    sublane_ok = (ax == x.ndim - 2) and (n % (8 * packing) == 0)
    if lane_ok or sublane_ok:
        return pltpu.roll(x, n - s, ax)
    return jnp.roll(x, -s, axis=ax)


def _mod(x, n):
    """x % n for a non-negative int32 iota, avoiding vector modulo when easy."""
    if n == 1:
        return jnp.zeros_like(x)
    if n & (n - 1) == 0:  # power of two
        return jnp.bitwise_and(x, n - 1)
    return x % n


def _smoothness_kernel(hp_ref, ox_ref, oa_ref, ob_ref, *, w, k, m,
                       tiles_per_chunk, n_tiles, guard_tail):
    """One image-aligned row tile.

    hp_ref is a (tile_p, k*W) lane-packed tile: lane l of packed row r holds
    the height at image row (r*k + l//W), column (l % W); packed row r belongs
    to image r // m (tiles hold whole images).

    Accumulates three per-lane f32 partial sums; masking/scaling is deferred
    to the wrapper (lane-separable masks), except the one row-dependent mask
    (last image row has no row below) which is a (tile_p, 1) 0/1 vector here.
      ox: sum_rows |h[r,l] - h[r,l+1]|      (horizontal; wrapper mask l%W != W-1)
      oa: sum_rows |h[r,l] - h[r,l+W]|      (vertical inside packed row;
                                             wrapper mask l < (k-1)*W)
      ob: sum_rows |h[r,l] - below| * vrow  (vertical crossing packed rows;
                                             wrapper mask l >= (k-1)*W)
    """
    i = pl.program_id(1)

    @pl.when(i == 0)
    def _init():
        ox_ref[...] = jnp.zeros_like(ox_ref)
        oa_ref[...] = jnp.zeros_like(oa_ref)
        ob_ref[...] = jnp.zeros_like(ob_ref)

    def accumulate():
        h = hp_ref[...]                       # stays in input dtype (bf16 ok)
        tp, _lanes = h.shape

        # Horizontal neighbour: lane + 1 (wrap lanes are masked in wrapper).
        right = _shift_up(h, 1, axis=1)
        sx = jnp.sum(jnp.abs(h - right), axis=0, keepdims=True,
                     dtype=jnp.float32)                          # (1, lanes)
        ox_ref[...] += sx[None]

        # Vertical neighbour inside the packed row: lane + W (segments 0..k-2).
        if k > 1:
            same = _shift_up(h, w, axis=1)
            nxt = _shift_up(same, 1, axis=0)   # rolls commute: 3 rolls total
            sa = jnp.sum(jnp.abs(h - same), axis=0, keepdims=True,
                         dtype=jnp.float32)
            oa_ref[...] += sa[None]
        else:
            nxt = _shift_up(h, 1, axis=0)      # plain row below

        # Vertical neighbour crossing packed rows (last segment / k==1 case).
        # Row mask: the last packed row of each image has no row below; tiles
        # are image-aligned so the tile-end wrap row is always masked too.
        if m > 1:
            prow = jax.lax.broadcasted_iota(jnp.int32, (tp, 1), 0)
            vrow = (_mod(prow, m) != (m - 1)).astype(h.dtype)
            sb = jnp.sum(jnp.abs(h - nxt) * vrow, axis=0, keepdims=True,
                         dtype=jnp.float32)
            ob_ref[...] += sb[None]

    if guard_tail:
        # cdiv tail: the last block of the last chunk is a clamped duplicate
        # of a real tile -- skip its accumulation.
        @pl.when(pl.program_id(0) * tiles_per_chunk + i < n_tiles)
        def _():
            accumulate()
    else:
        accumulate()


def _choose_packing(height, width):
    """Lane-packing factor k (a divisor of H): pack k image rows into one
    (k*W)-lane packed row so the lane axis is >= 128 wide, preferring k*W to
    be a multiple of 128 so shifts stay on the XLU rotate path."""
    if width >= 128:
        return 1
    divisors = [d for d in range(1, height + 1) if height % d == 0]
    big = [d for d in divisors if d * width >= 128]
    aligned = [d for d in big if (d * width) % 128 == 0]
    if aligned:
        return aligned[0]
    if big:
        return big[0]
    return height


def _choose_images_per_tile(n_imgs, rows_per_img, lanes, itemsize, sublanes,
                            target_bytes):
    """Largest divisor d of n_imgs whose (d*rows_per_img, lanes) block fits the
    byte target and whose row count is a multiple of the dtype-native sublane
    count (8 f32 / 16 bf16 / 32 int8) -- or equals the full extent."""
    best = None
    for d in range(1, n_imgs + 1):
        if n_imgs % d:
            continue
        tile_rows = d * rows_per_img
        aligned = (tile_rows % sublanes == 0) or (d == n_imgs)
        if not aligned:
            continue
        if tile_rows * lanes * itemsize <= target_bytes:
            best = d
    if best is None:
        for d in range(1, n_imgs + 1):
            if n_imgs % d:
                continue
            if (d * rows_per_img) % sublanes == 0 or d == n_imgs:
                best = d
                break
    return best


def _vmem_capacity_bytes():
    try:
        cap = int(pltpu.get_tpu_info().vmem_capacity_bytes)
        if cap > 0:
            return cap
    except Exception:
        pass
    return 64 << 20  # conservative floor (v7x has 64 MiB per TensorCore)


def smoothness_loss(height_map: jax.Array, weight: float = 1.0,
                    target_block_bytes: Optional[int] = None) -> jax.Array:
    """Pallas implementation of SmoothnessLoss.forward. Returns f32 scalar."""
    B, C, H, W = height_map.shape
    itemsize = jnp.dtype(height_map.dtype).itemsize
    packing = max(1, 4 // itemsize)
    sublanes = 8 * packing

    k = _choose_packing(H, W)            # lane-packing factor (k | H)
    lanes = k * W
    m = H // k                           # packed rows per image
    n_imgs = B * C
    p_rows = n_imgs * m
    # Pure row-major reshape (contiguous): free, no data movement.
    hp = height_map.reshape(p_rows, lanes)

    # --- tile-size / VMEM budget (generation-aware) ----------------------
    vmem_cap = _vmem_capacity_bytes()
    safe_max_block = max(1 << 20, (vmem_cap - (16 << 20)) // 4)
    if target_block_bytes is None:
        target_block_bytes = min(16 << 20, safe_max_block)
    tb = min(int(target_block_bytes), safe_max_block)

    d = _choose_images_per_tile(n_imgs, m, lanes, itemsize, sublanes, tb)
    tile_p = d * m                       # image-aligned row tile
    n_tiles = n_imgs // d

    # --- 2-chunk split of the tile range (v7x megacore; harmless on 1-TC) -
    nc = 2 if n_tiles >= 2 else 1
    tpc = (n_tiles + nc - 1) // nc
    guard_tail = (nc * tpc != n_tiles)

    def in_index(c, i):
        t = c * tpc + i
        if guard_tail:
            t = jnp.minimum(t, n_tiles - 1)   # clamp the duplicate tail block
        return (t, 0)

    out_index = lambda c, i: (c, 0, 0)

    # --- scales (weight folded with the mean denominators), applied here --
    n_gx = B * C * H * (W - 1)
    n_gy = B * C * (H - 1) * W
    scale_x = float(weight) / n_gx if n_gx > 0 else 0.0
    scale_y = float(weight) / n_gy if n_gy > 0 else 0.0

    kernel = functools.partial(
        _smoothness_kernel, w=W, k=k, m=m,
        tiles_per_chunk=int(tpc), n_tiles=int(n_tiles), guard_tail=guard_tail)

    block_bytes = tile_p * lanes * itemsize
    vmem_limit = int(min(max(32 << 20, 4 * block_bytes + (4 << 20)),
                         vmem_cap - (4 << 20)))

    if tpc >= 3:
        try:
            in_spec = pl.BlockSpec((tile_p, lanes), in_index,
                                   pipeline_mode=pl.Buffered(3))
        except Exception:  # older jax without pipeline_mode support
            in_spec = pl.BlockSpec((tile_p, lanes), in_index)
    else:
        in_spec = pl.BlockSpec((tile_p, lanes), in_index)

    out_block = pl.BlockSpec((1, 1, lanes), out_index)
    out_sds = jax.ShapeDtypeStruct((nc, 1, lanes), jnp.float32)

    ox, oa, ob = pl.pallas_call(
        kernel,
        grid=(nc, int(tpc)),
        in_specs=[in_spec],
        out_specs=[out_block, out_block, out_block],
        out_shape=[out_sds, out_sds, out_sds],
        compiler_params=pltpu.CompilerParams(
            dimension_semantics=("parallel", "arbitrary"),
            vmem_limit_bytes=vmem_limit),
        cost_estimate=pl.CostEstimate(
            flops=int(9 * p_rows * lanes),
            transcendentals=0,
            bytes_accessed=int(p_rows * lanes * itemsize + 3 * nc * lanes * 4)),
    )(hp)

    # --- final masking / scaling on the tiny per-lane sums (pure XLA) -----
    lane_idx = jnp.arange(lanes, dtype=jnp.int32)
    mask_x = (lane_idx % W != (W - 1)).astype(jnp.float32)      # last col of each W-segment
    mask_a = (lane_idx < (k - 1) * W).astype(jnp.float32)       # within-packed-row vertical
    mask_b = (lane_idx >= (k - 1) * W).astype(jnp.float32)      # crossing-packed-row vertical
    sum_x = jnp.sum(ox * mask_x)
    sum_y = jnp.sum(oa * mask_a) + jnp.sum(ob * mask_b)
    return scale_x * sum_x + scale_y * sum_y


def _reference_loss(height_map: jax.Array, weight: float = 1.0) -> jax.Array:
    h = height_map.astype(jnp.float32)
    gx = jnp.abs(h[:, :, :, :-1] - h[:, :, :, 1:])
    gy = jnp.abs(h[:, :, :-1, :] - h[:, :, 1:, :])
    return weight * (jnp.mean(gx) + jnp.mean(gy))


if __name__ == "__main__":
    key = jax.random.PRNGKey(0)
    k1, k2, k3, k4, k5 = jax.random.split(key, 5)

    # Primary case (B, 1, H, W); W=16 < 128 exercises lane packing (k=8 -> 128 lanes).
    hm = jax.random.uniform(k1, (2, 1, 16, 16), dtype=jnp.float32)
    loss = jax.block_until_ready(smoothness_loss(hm, 1.0))
    ref = jax.block_until_ready(_reference_loss(hm, 1.0))
    assert jnp.allclose(loss, ref, rtol=1e-5, atol=1e-6), (loss, ref)

    # Wide case: W=128 -> k=1 path (pure sublane vertical shift).
    hm2 = jax.random.uniform(k2, (2, 1, 16, 128), dtype=jnp.float32)
    loss2 = jax.block_until_ready(smoothness_loss(hm2, 0.7))
    ref2 = jax.block_until_ready(_reference_loss(hm2, 0.7))
    assert jnp.allclose(loss2, ref2, rtol=1e-5, atol=1e-6), (loss2, ref2)

    # Multi-tile, even tile count: 4 KiB tile target -> 4 tiles split across
    # two "parallel" chunks; exercises the resident per-lane accumulators.
    hm3 = jax.random.uniform(k3, (4, 1, 64, 16), dtype=jnp.float32)
    loss3 = jax.block_until_ready(smoothness_loss(hm3, 1.3, target_block_bytes=4096))
    ref3 = jax.block_until_ready(_reference_loss(hm3, 1.3))
    assert jnp.allclose(loss3, ref3, rtol=1e-5, atol=1e-6), (loss3, ref3)

    # Odd tile count: exercises the cdiv tail (clamped index_map + pl.when skip).
    hm4 = jax.random.uniform(k4, (3, 1, 64, 16), dtype=jnp.float32)
    loss4 = jax.block_until_ready(smoothness_loss(hm4, 0.9, target_block_bytes=4096))
    ref4 = jax.block_until_ready(_reference_loss(hm4, 0.9))
    assert jnp.allclose(loss4, ref4, rtol=1e-5, atol=1e-6), (loss4, ref4)

    # bf16 input: diff/abs stays bf16 on the VPU, accumulation in f32.
    hm5 = jax.random.uniform(k5, (2, 1, 16, 16),
                             dtype=jnp.float32).astype(jnp.bfloat16)
    loss5 = jax.block_until_ready(smoothness_loss(hm5, 1.0))
    ref5 = jax.block_until_ready(_reference_loss(hm5, 1.0))
    assert jnp.allclose(loss5, ref5, rtol=1e-2, atol=1e-3), (loss5, ref5)

    print("KERNEL_OK")
</pallas_src>

<mosaic_0001>
module attributes {stable_mosaic.version = 11 : i64} {
  func.func @_smoothness_kernel(%arg0: i32, %arg1: i32, %arg2: memref<4x128xf32, #tpu.memory_space<vmem>>, %arg3: memref<1x1x128xf32, #tpu.memory_space<vmem>>, %arg4: memref<1x1x128xf32, #tpu.memory_space<vmem>>, %arg5: memref<1x1x128xf32, #tpu.memory_space<vmem>>) attributes {dimension_semantics = [#tpu.dimension_semantics<parallel>, #tpu.dimension_semantics<arbitrary>], iteration_bounds = array<i64: 1, 1>, scalar_prefetch = 0 : i64, scratch_operands = 0 : i64, tpu.core_type = #tpu.core_type<tc>, window_params = [{transform_indices = @transform_0, window_bounds = array<i64: 4, 128>}, {transform_indices = @transform_1, window_bounds = array<i64: 1, 1, 128>}, {transform_indices = @transform_2, window_bounds = array<i64: 1, 1, 128>}, {transform_indices = @transform_3, window_bounds = array<i64: 1, 1, 128>}]} {
    %c0_i32 = arith.constant 0 : i32
    %0 = arith.cmpi eq, %arg1, %c0_i32 : i32
    %1 = arith.extui %0 : i1 to i32
    %c0_i32_0 = arith.constant 0 : i32
    %2 = arith.cmpi ne, %1, %c0_i32_0 : i32
    scf.if %2 {
      %cst_23 = arith.constant 0.000000e+00 : f32
      %42 = vector.broadcast %cst_23 : f32 to vector<1x1x128xf32>
      %c0_24 = arith.constant 0 : index
      %c0_25 = arith.constant 0 : index
      %c0_26 = arith.constant 0 : index
      %43 = vector.load %arg3[%c0_24, %c0_25, %c0_26] : memref<1x1x128xf32, #tpu.memory_space<vmem>>, vector<1x1x128xf32>
      tpu.vector_store %arg3[%c0_24, %c0_25, %c0_26], %42 {strides = array<i32>} : memref<1x1x128xf32, #tpu.memory_space<vmem>>, vector<1x1x128xf32>,
      %cst_27 = arith.constant 0.000000e+00 : f32
      %44 = vector.broadcast %cst_27 : f32 to vector<1x1x128xf32>
      %c0_28 = arith.constant 0 : index
      %c0_29 = arith.constant 0 : index
      %c0_30 = arith.constant 0 : index
      %45 = vector.load %arg4[%c0_28, %c0_29, %c0_30] : memref<1x1x128xf32, #tpu.memory_space<vmem>>, vector<1x1x128xf32>
      tpu.vector_store %arg4[%c0_28, %c0_29, %c0_30], %44 {strides = array<i32>} : memref<1x1x128xf32, #tpu.memory_space<vmem>>, vector<1x1x128xf32>,
      %cst_31 = arith.constant 0.000000e+00 : f32
      %46 = vector.broadcast %cst_31 : f32 to vector<1x1x128xf32>
      %c0_32 = arith.constant 0 : index
      %c0_33 = arith.constant 0 : index
      %c0_34 = arith.constant 0 : index
      %47 = vector.load %arg5[%c0_32, %c0_33, %c0_34] : memref<1x1x128xf32, #tpu.memory_space<vmem>>, vector<1x1x128xf32>
      tpu.vector_store %arg5[%c0_32, %c0_33, %c0_34], %46 {strides = array<i32>} : memref<1x1x128xf32, #tpu.memory_space<vmem>>, vector<1x1x128xf32>,
    } else {
    }
    %c0 = arith.constant 0 : index
    %c0_1 = arith.constant 0 : index
    %3 = vector.load %arg2[%c0, %c0_1] : memref<4x128xf32, #tpu.memory_space<vmem>>, vector<4x128xf32>
    %c127_i32 = arith.constant 127 : i32
    %4 = tpu.dynamic_rotate %3 by %c127_i32 dim 1 : vector<4x128xf32>, i32 -> vector<4x128xf32>
    %5 = arith.subf %3, %4 : vector<4x128xf32>
    %6 = math.absf %5 : vector<4x128xf32>
    %cst = arith.constant dense<0.000000e+00> : vector<128xf32>
    %7 = vector.multi_reduction <add>, %6, %cst [0] : vector<4x128xf32> to vector<128xf32>
    %8 = vector.shape_cast %7 : vector<128xf32> to vector<1x128xf32>
    %c0_2 = arith.constant 0 : index
    %c0_3 = arith.constant 0 : index
    %c0_4 = arith.constant 0 : index
    %9 = vector.load %arg3[%c0_2, %c0_3, %c0_4] : memref<1x1x128xf32, #tpu.memory_space<vmem>>, vector<1x1x128xf32>
    %10 = vector.shape_cast %8 : vector<1x128xf32> to vector<1x1x128xf32>
    %11 = arith.addf %9, %10 : vector<1x1x128xf32>
    %c0_5 = arith.constant 0 : index
    %c0_6 = arith.constant 0 : index
    %c0_7 = arith.constant 0 : index
    %12 = vector.load %arg3[%c0_5, %c0_6, %c0_7] : memref<1x1x128xf32, #tpu.memory_space<vmem>>, vector<1x1x128xf32>
    tpu.vector_store %arg3[%c0_5, %c0_6, %c0_7], %11 {strides = array<i32>} : memref<1x1x128xf32, #tpu.memory_space<vmem>>, vector<1x1x128xf32>,
    %c112_i32 = arith.constant 112 : i32
    %13 = tpu.dynamic_rotate %3 by %c112_i32 dim 1 : vector<4x128xf32>, i32 -> vector<4x128xf32>
    %14 = vector.extract_strided_slice %13 {offsets = [1, 0], sizes = [3, 128], strides = [1, 1]} : vector<4x128xf32> to vector<3x128xf32>
    %15 = vector.extract_strided_slice %13 {offsets = [0, 0], sizes = [1, 128], strides = [1, 1]} : vector<4x128xf32> to vector<1x128xf32>
    %16 = tpu.concatenate %14, %15 in 0 : vector<3x128xf32>, vector<1x128xf32> -> vector<4x128xf32>
    %17 = arith.subf %3, %13 : vector<4x128xf32>
    %18 = math.absf %17 : vector<4x128xf32>
    %cst_8 = arith.constant dense<0.000000e+00> : vector<128xf32>
    %19 = vector.multi_reduction <add>, %18, %cst_8 [0] : vector<4x128xf32> to vector<128xf32>
    %20 = vector.shape_cast %19 : vector<128xf32> to vector<1x128xf32>
    %c0_9 = arith.constant 0 : index
    %c0_10 = arith.constant 0 : index
    %c0_11 = arith.constant 0 : index
    %21 = vector.load %arg4[%c0_9, %c0_10, %c0_11] : memref<1x1x128xf32, #tpu.memory_space<vmem>>, vector<1x1x128xf32>
    %22 = vector.shape_cast %20 : vector<1x128xf32> to vector<1x1x128xf32>
    %23 = arith.addf %21, %22 : vector<1x1x128xf32>
    %c0_12 = arith.constant 0 : index
    %c0_13 = arith.constant 0 : index
    %c0_14 = arith.constant 0 : index
    %24 = vector.load %arg4[%c0_12, %c0_13, %c0_14] : memref<1x1x128xf32, #tpu.memory_space<vmem>>, vector<1x1x128xf32>
    tpu.vector_store %arg4[%c0_12, %c0_13, %c0_14], %23 {strides = array<i32>} : memref<1x1x128xf32, #tpu.memory_space<vmem>>, vector<1x1x128xf32>,
    %25 = tpu.iota {dimensions = array<i32: 0>} : vector<4x1xi32>
    %c1_i32 = arith.constant 1 : i32
    %26 = vector.broadcast %c1_i32 : i32 to vector<4x1xi32>
    %27 = arith.andi %25, %26 : vector<4x1xi32>
    %c1_i32_15 = arith.constant 1 : i32
    %28 = vector.broadcast %c1_i32_15 : i32 to vector<4x1xi32>
    %29 = arith.cmpi ne, %27, %28 : vector<4x1xi32>
    %30 = arith.extui %29 : vector<4x1xi1> to vector<4x1xi32>
    %31 = arith.sitofp %30 : vector<4x1xi32> to vector<4x1xf32>
    %32 = arith.subf %3, %16 : vector<4x128xf32>
    %33 = math.absf %32 : vector<4x128xf32>
    %34 = vector.broadcast %31 : vector<4x1xf32> to vector<4x128xf32>
    %35 = arith.mulf %33, %34 : vector<4x128xf32>
    %cst_16 = arith.constant dense<0.000000e+00> : vector<128xf32>
    %36 = vector.multi_reduction <add>, %35, %cst_16 [0] : vector<4x128xf32> to vector<128xf32>
    %37 = vector.shape_cast %36 : vector<128xf32> to vector<1x128xf32>
    %c0_17 = arith.constant 0 : index
    %c0_18 = arith.constant 0 : index
    %c0_19 = arith.constant 0 : index
    %38 = vector.load %arg5[%c0_17, %c0_18, %c0_19] : memref<1x1x128xf32, #tpu.memory_space<vmem>>, vector<1x1x128xf32>
    %39 = vector.shape_cast %37 : vector<1x128xf32> to vector<1x1x128xf32>
    %40 = arith.addf %38, %39 : vector<1x1x128xf32>
    %c0_20 = arith.constant 0 : index
    %c0_21 = arith.constant 0 : index
    %c0_22 = arith.constant 0 : index
    %41 = vector.load %arg5[%c0_20, %c0_21, %c0_22] : memref<1x1x128xf32, #tpu.memory_space<vmem>>, vector<1x1x128xf32>
    tpu.vector_store %arg5[%c0_20, %c0_21, %c0_22], %40 {strides = array<i32>} : memref<1x1x128xf32, #tpu.memory_space<vmem>>, vector<1x1x128xf32>,
    return
  }
  func.func @transform_0(%arg0: i32, %arg1: i32) -> (i32, i32) {
    %c1_i32 = arith.constant 1 : i32
    %0 = arith.muli %arg0, %c1_i32 : i32
    %1 = arith.addi %0, %arg1 : i32
    %c0_i32 = arith.constant 0 : i32
    %c0_i32_0 = arith.constant 0 : i32
    return %1, %c0_i32 : i32, i32
  }
  func.func @transform_1(%arg0: i32, %arg1: i32) -> (i32, i32, i32) {
    %c0_i32 = arith.constant 0 : i32
    %c0_i32_0 = arith.constant 0 : i32
    %c0_i32_1 = arith.constant 0 : i32
    return %arg0, %c0_i32, %c0_i32_0 : i32, i32, i32
  }
  func.func @transform_2(%arg0: i32, %arg1: i32) -> (i32, i32, i32) {
    %c0_i32 = arith.constant 0 : i32
    %c0_i32_0 = arith.constant 0 : i32
    %c0_i32_1 = arith.constant 0 : i32
    return %arg0, %c0_i32, %c0_i32_0 : i32, i32, i32
  }
  func.func @transform_3(%arg0: i32, %arg1: i32) -> (i32, i32, i32) {
    %c0_i32 = arith.constant 0 : i32
    %c0_i32_0 = arith.constant 0 : i32
    %c0_i32_1 = arith.constant 0 : i32
    return %arg0, %c0_i32, %c0_i32_0 : i32, i32, i32
  }
}

</mosaic_0001>

<llo_original>
// kernel: tpu_custom_call.1
$region0: #{tpu_custom_call.1}
  #allocation0 [shape = 'u32[]', space=smem, size = 0x4, offset = 0x4, fixed_abs, tag = 'smem constant byte address 0x4 - core index']
  #allocation1 [shape = 'u32[144,128]{1,0:T(1,128)}', space=vmem, size = 0x12000, scoped, tag = 'internal scratch']
  %s0 = inlined_call_operand.hbm [shape: f32[4,128], index: 0, kind: input, shape index: {}]
  %s1 = inlined_call_operand.hbm [shape: f32[1,1,128], index: 1, kind: output, shape index: {0}]
  %s2 = inlined_call_operand.hbm [shape: f32[1,1,128], index: 2, kind: output, shape index: {1}]
  %s3 = inlined_call_operand.hbm [shape: f32[1,1,128], index: 3, kind: output, shape index: {2}]
  %4 = xla_tuple %s1, %s2, %s3
  %s5 = sld [smem:[#allocation0]]
  $region38: #{tpu_custom_call.1} parent=0
    _
  %s7 = ssub.s32 1, %s5
  %s8 = scalar_select 0, %s7, %s5
  $region1: #{tpu_custom_call.1} parent=0
    #allocation2 [shape = 'u8[2048]{0}', space=vmem, size = 0x800, scoped, tag = 'input window, operand 0, single buffered']
    #allocation3 [shape = 's32[1]{0}', space=sflag, size = 0x4, scoped, tag = 'scoped memory for tpu_custom_call.1']
    #allocation4 [shape = 's32[1]{0}', space=sflag, size = 0x4, scoped, tag = 'scoped memory for tpu_custom_call.1']
    #allocation5 [shape = 'u8[512]{0}', space=vmem, size = 0x400, scoped, tag = 'output window, operand 0, single buffered']
    #allocation6 [shape = 'u8[512]{0}', space=vmem, size = 0x400, scoped, tag = 'output window, operand 1, single buffered']
    #allocation7 [shape = 's32[1]{0}', space=sflag, size = 0x4, scoped, tag = 'scoped memory for tpu_custom_call.1']
    #allocation8 [shape = 'u8[512]{0}', space=vmem, size = 0x400, scoped, tag = 'output window, operand 2, single buffered']
    %9 = vsyncpa [#allocation3], 0
    %10 = vsyncpa [#allocation4], 0
    %11 = vsyncpa [#allocation7], 0
    // Predicated region
    $region2: #{tpu_custom_call.1} parent=1 // pred_check
      _
    $region3: #{tpu_custom_call.1} parent=1 // pred_check_branch
      %13 = sbr.rel (0) target = $region5
    $region4: #{tpu_custom_call.1} parent=1 // pred_region
      %s14 = sadd.s32 0, 0
      %s16 = ssub.s32 64, 64
      %17 = vsyncadd [#allocation3], %s16
      %s18 = smul.addr %s14, 64
      %s19 = scalar_lea.hbm %s0, %s18
      %s21 = sshll.u32 [#allocation2], 4
      %s22 = int_to_ptr.vmem [resolvable:$true] %s21
      %24 = dma.hbm_to_vmem [thread:$0]  %s19, 64, %s22, [#allocation3]
    $region5: #{tpu_custom_call.1} parent=1 // pred_fallthru
      _
    // Predicated region
    $region6: #{tpu_custom_call.1} parent=1 // pred_check
      _
    $region7: #{tpu_custom_call.1} parent=1 // pred_check_branch
      %26 = sbr.rel (0) target = $region9
    $region8: #{tpu_custom_call.1} parent=1 // pred_region
      %27 = dma.done [#allocation3], 64
    $region9: #{tpu_custom_call.1} parent=1 // pred_fallthru
      _
    %s28 = sadd.s32 0, 0
    %p29 = scmp.eq.s32.totalorder 0, 0
    // Predicated region
    $region10: #{tpu_custom_call.1} parent=1 // pred_check
      %p30 = pneg %p29
    $region11: #{tpu_custom_call.1} parent=1 // pred_check_branch
      %32 = sbr.rel (%p30) target = $region13
    $region12: #{tpu_custom_call.1} parent=1 // pred_region
      %33 = vst [vmem:[#allocation5] sm:$0x1] 0.0
      %34 = vst [vmem:[#allocation6] sm:$0x1] 0.0
      %35 = vst [vmem:[#allocation8] sm:$0x1] 0.0
    $region13: #{tpu_custom_call.1} parent=1 // pred_fallthru
      _
    %v36 = vld [vmem:[#allocation2] sm:$0xf]
    %37 = vrot.lane.b32.xlu0 %v36, 127
    %v38 = vpop.permute.xlu0 %37
    %v39 = vsub.f32 %v36, %v38
    %v40 = vand.u32 2147483647, %v39
    %vm41 = vcmask 1043456
    %v42 = vsel %vm41, %v40, 0.0
    %v43 = vrot.slane %v42, 4
    %v44 = vadd.f32 %v42, %v43
    %v45 = vrot.slane %v44, 2
    %v46 = vadd.f32 %v44, %v45
    %v47 = vrot.slane %v46, 1
    %v48 = vadd.f32 %v46, %v47
    %v49 = vld [vmem:[#allocation5] sm:$0x1]
    %v50 = vadd.f32 %v49, %v48
    %51 = vst [vmem:[#allocation5] sm:$0x1] %v50
    %52 = vrot.lane.b32.xlu0 %v36, 112
    %v53 = vpop.permute.xlu0 %52
    %v55 = vrot.slane %v53, 1
    %v57 = vrot.slane %v53, 5
    %vm59 = vcmask 1042432
    %v60 = vsel %vm59, %v55, %v57
    %v61 = vsub.f32 %v36, %v53
    %v62 = vand.u32 2147483647, %v61
    %v63 = vsel %vm41, %v62, 0.0
    %v64 = vrot.slane %v63, 4
    %v65 = vadd.f32 %v63, %v64
    %v66 = vrot.slane %v65, 2
    %v67 = vadd.f32 %v65, %v66
    %v68 = vrot.slane %v67, 1
    %v69 = vadd.f32 %v67, %v68
    %v70 = vld [vmem:[#allocation6] sm:$0x1]
    %v71 = vadd.f32 %v70, %v69
    %72 = vst [vmem:[#allocation6] sm:$0x1] %v71
    %v73 = vlaneseq
    %v74 = vshrl.u32 %v73, 7
    %v75 = vand.u32 %v74, 1
    %vm76 = vcmp.ne.s32.totalorder %v75, 1
    %v77 = vsel %vm76, 1, 0
    %v78 = vcvt.s32.f32 %v77
    %v79 = vsub.f32 %v36, %v60
    %v80 = vand.u32 2147483647, %v79
    %v81 = vmul.f32 %v80, %v78
    %v82 = vsel %vm41, %v81, 0.0
    %v83 = vrot.slane %v82, 4
    %v84 = vadd.f32 %v82, %v83
    %v85 = vrot.slane %v84, 2
    %v86 = vadd.f32 %v84, %v85
    %v87 = vrot.slane %v86, 1
    %v88 = vadd.f32 %v86, %v87
    %v89 = vld [vmem:[#allocation8] sm:$0x1]
    %v90 = vadd.f32 %v89, %v88
    %91 = vst [vmem:[#allocation8] sm:$0x1] %v90
    // Predicated region
    $region14: #{tpu_custom_call.1} parent=1 // pred_check
      _
    $region15: #{tpu_custom_call.1} parent=1 // pred_check_branch
      %93 = sbr.rel (0) target = $region17
    $region16: #{tpu_custom_call.1} parent=1 // pred_region
      %s95 = ssub.s32 16, 16
      %96 = vsyncadd [#allocation4], %s95
      %s98 = sshll.u32 [#allocation5], 4
      %s99 = int_to_ptr.vmem [resolvable:$true] %s98
      %101 = dma.vmem_to_hbm [thread:$0]  %s99, 16, %s1, [#allocation4]
    $region17: #{tpu_custom_call.1} parent=1 // pred_fallthru
      _
    // Predicated region
    $region18: #{tpu_custom_call.1} parent=1 // pred_check
      _
    $region19: #{tpu_custom_call.1} parent=1 // pred_check_branch
      %103 = sbr.rel (0) target = $region21
    $region20: #{tpu_custom_call.1} parent=1 // pred_region
      %s105 = ssub.s32 16, 16
      %106 = vsyncadd [#allocation7], %s105
      %s108 = sshll.u32 [#allocation6], 4
      %s109 = int_to_ptr.vmem [resolvable:$true] %s108
      %111 = dma.vmem_to_hbm [thread:$0]  %s109, 16, %s2, [#allocation7]
    $region21: #{tpu_custom_call.1} parent=1 // pred_fallthru
      _
    // Predicated region
    $region22: #{tpu_custom_call.1} parent=1 // pred_check
      _
    $region23: #{tpu_custom_call.1} parent=1 // pred_check_branch
      %113 = sbr.rel (0) target = $region25
    $region24: #{tpu_custom_call.1} parent=1 // pred_region
      %s115 = ssub.s32 16, 16
      %116 = vsyncadd [#allocation7], %s115
      %s118 = sshll.u32 [#allocation8], 4
      %s119 = int_to_ptr.vmem [resolvable:$true] %s118
      %121 = dma.vmem_to_hbm [thread:$0]  %s119, 16, %s3, [#allocation7]
    $region25: #{tpu_custom_call.1} parent=1 // pred_fallthru
      _
    // Predicated region
    $region26: #{tpu_custom_call.1} parent=1 // pred_check
      _
    $region27: #{tpu_custom_call.1} parent=1 // pred_check_branch
      %123 = sbr.rel (0) target = $region29
    $region28: #{tpu_custom_call.1} parent=1 // pred_region
      %124 = dma.done [#allocation4], 16
    $region29: #{tpu_custom_call.1} parent=1 // pred_fallthru
      _
    // Predicated region
    $region30: #{tpu_custom_call.1} parent=1 // pred_check
      _
    $region31: #{tpu_custom_call.1} parent=1 // pred_check_branch
      %126 = sbr.rel (0) target = $region33
    $region32: #{tpu_custom_call.1} parent=1 // pred_region
      %127 = dma.done [#allocation7], 16
    $region33: #{tpu_custom_call.1} parent=1 // pred_fallthru
      _
    // Predicated region
    $region34: #{tpu_custom_call.1} parent=1 // pred_check
      _
    $region35: #{tpu_custom_call.1} parent=1 // pred_check_branch
      %129 = sbr.rel (0) target = $region37
    $region36: #{tpu_custom_call.1} parent=1 // pred_region
      %130 = dma.done [#allocation7], 16
    $region37: #{tpu_custom_call.1} parent=1 // pred_fallthru
      _
    %131 = vsyncpa [#allocation3], 1
    %132 = vsyncpa [#allocation4], 1
    %133 = vsyncpa [#allocation7], 1

</llo_original>
